<compile_context>
chip_gen: v7x
topology: tpu7x:2x2x1
jax: 0.10.0
libtpu: 0.0.40
codegen_flags: <defaults>
</compile_context>

<pallas_src>
import functools

import jax
import jax.numpy as jnp
from jax.experimental import pallas as pl
from jax.experimental.pallas import tpu as pltpu


def _round_up(a, m):
    return (a + m - 1) // m * m


def fin_kernel(x_ref,
               w1_ref, b1_ref,
               w2_ref, b2_ref,
               wfc_ref, bfc_ref,
               wout_ref, bout_ref,
               out_ref, *, out_col, mxu_dtype=None):
    cast = (lambda a: a) if mxu_dtype is None else (lambda a: a.astype(mxu_dtype))

    xf = x_ref[...]                                            # (tb, L*C) f32

    # Conv1d #1: both taps and all time steps in one banded matmul, + ReLU.
    h1 = jnp.maximum(
        jnp.dot(cast(xf), cast(w1_ref[...]),
                preferred_element_type=jnp.float32) + b1_ref[...], 0.0)
    # (tb, (L-1)*H)

    # Conv1d #2: same banded-weight trick, + ReLU.
    h2 = jnp.maximum(
        jnp.dot(cast(h1), cast(w2_ref[...]),
                preferred_element_type=jnp.float32) + b2_ref[...], 0.0)
    # (tb, (L-2)*H)

    # AdaptiveAvgPool1d(1) folded into the tiled/scaled/lane-padded fc weight,
    # then Linear + ReLU. Lanes >= output_dim are exactly zero by construction.
    feats = jnp.maximum(
        jnp.dot(cast(h2), cast(wfc_ref[...]),
                preferred_element_type=jnp.float32) + bfc_ref[...], 0.0)
    # (tb, PAD)

    # Outcome head on the VPU/XLU (no N=1 MXU matmul): row-dot + sigmoid.
    logit = jnp.sum(feats * wout_ref[...], axis=-1, keepdims=True) + bout_ref[...]
    outcome = jax.nn.sigmoid(logit)                            # (tb, 1)

    # Merge outcome into lane `out_col` of the feature slab -> one unmasked,
    # lane-dense 128-wide store.
    lanes = jax.lax.broadcasted_iota(jnp.int32, feats.shape, dimension=1)
    out_ref[...] = jnp.where(lanes == out_col, outcome, feats).astype(out_ref.dtype)


def _banded_conv_weight(wa, wb, steps):
    """Fold a kernel_size=2 conv (taps wa/wb: (Cin, Cout)) over `steps` output
    positions into one ((steps+1)*Cin, steps*Cout) band matrix."""
    cin, cout = wa.shape
    W = jnp.zeros(((steps + 1) * cin, steps * cout), jnp.float32)
    for t in range(steps):
        W = W.at[t * cin:(t + 1) * cin, t * cout:(t + 1) * cout].set(wa)
        W = W.at[(t + 1) * cin:(t + 2) * cin, t * cout:(t + 1) * cout].set(wb)
    return W


def fin_forward(x, params, *, tb=None, mxu_dtype=None):
    B, L, C = x.shape
    assert L >= 3, "FIN needs seq_len >= 3 (two kernel_size=2 convs + pool)."
    H = params["w1a"].shape[1]
    O = params["wfc"].shape[1]
    f32 = jnp.float32

    n1 = (L - 1) * H                     # conv1 output width (time * channels)
    n2 = (L - 2) * H                     # conv2 output width
    PAD = _round_up(max(O + 1, 128), 128)  # merged (features+outcome) lane width

    # ---- Fold the model into three lane-dense matmul weights (trace time).
    w1 = _banded_conv_weight(params["w1a"].astype(f32), params["w1b"].astype(f32), L - 1)
    b1 = jnp.tile(params["b1"].reshape(1, H).astype(f32), (1, L - 1))           # (1, n1)
    w2 = _banded_conv_weight(params["w2a"].astype(f32), params["w2b"].astype(f32), L - 2)
    b2 = jnp.tile(params["b2"].reshape(1, H).astype(f32), (1, L - 2))           # (1, n2)

    wfc_wide = jnp.zeros((H, PAD), f32).at[:, :O].set(params["wfc"].astype(f32))
    wfc_fold = jnp.tile(wfc_wide / (L - 2), (L - 2, 1))                         # (n2, PAD)
    bfc_wide = jnp.zeros((1, PAD), f32).at[:, :O].set(params["bfc"].reshape(1, O).astype(f32))
    wout_wide = jnp.zeros((1, PAD), f32).at[:, :O].set(params["wout"].astype(f32).T)
    bout = params["bout"].reshape(1, 1).astype(f32)

    # ---- Batch tile: biggest that fits a conservative VMEM budget (v7x has
    # 32 MiB scoped / 64 MiB physical), but split so grid >= 2 when B allows
    # (v7x megacore). Batch is zero-padded to a multiple of the tile.
    lane_pad = lambda n: _round_up(n, 128)
    row_bytes = 4 * (3 * lane_pad(L * C)        # x: 2 pipeline buffers + value
                     + lane_pad(n1) + lane_pad(n2)  # h1, h2 slabs
                     + 4 * PAD)                 # feats, merged, 2 out buffers
    weight_bytes = 4 * 2 * (w1.size + b1.size + w2.size + b2.size
                            + wfc_fold.size + bfc_wide.size + wout_wide.size + 1)
    vmem_budget = 24 * 1024 * 1024
    tb_max = max(8, min(2048, (vmem_budget - weight_bytes) // max(row_bytes, 1) // 8 * 8))
    if tb is None:
        tb = B if B <= 8 else min(_round_up(pl.cdiv(B, 2), 8), tb_max)
    B_pad = _round_up(B, tb)
    grid = (B_pad // tb,)

    xf = x.reshape(B, L * C).astype(f32)
    if B_pad != B:
        xf = jnp.pad(xf, ((0, B_pad - B), (0, 0)))

    kernel = functools.partial(fin_kernel, out_col=O, mxu_dtype=mxu_dtype)

    def wspec(shape):
        return pl.BlockSpec(shape, lambda i, _n=len(shape): (0,) * _n)

    flops = 2 * B_pad * (w1.shape[0] * w1.shape[1]
                         + w2.shape[0] * w2.shape[1]
                         + wfc_fold.shape[0] * PAD + PAD)
    bytes_accessed = 4 * (xf.size + w1.size + b1.size + w2.size + b2.size
                          + wfc_fold.size + bfc_wide.size + wout_wide.size + 1
                          + B_pad * PAD)
    vmem_limit = int(min(64 * 1024 * 1024,
                         max(32 * 1024 * 1024, 2 * (weight_bytes + tb * row_bytes))))

    merged = pl.pallas_call(
        kernel,
        out_shape=jax.ShapeDtypeStruct((B_pad, PAD), f32),
        grid=grid,
        in_specs=[
            pl.BlockSpec((tb, L * C), lambda i: (i, 0)),   # x (batch-tiled, flat)
            wspec((L * C, n1)), wspec((1, n1)),            # conv1 band + bias
            wspec((n1, n2)), wspec((1, n2)),               # conv2 band + bias
            wspec((n2, PAD)), wspec((1, PAD)),             # pool+fc (lane-padded)
            wspec((1, PAD)), wspec((1, 1)),                # outcome head
        ],
        out_specs=pl.BlockSpec((tb, PAD), lambda i: (i, 0)),
        compiler_params=pltpu.CompilerParams(
            dimension_semantics=("parallel",),
            vmem_limit_bytes=vmem_limit),
        cost_estimate=pl.CostEstimate(flops=flops, transcendentals=B_pad,
                                      bytes_accessed=bytes_accessed),
    )(xf, w1, b1, w2, b2, wfc_fold, bfc_wide, wout_wide, bout)

    feats = merged[:B, :O]
    outcome = merged[:B, O:O + 1]
    return feats, outcome


def fin_reference(x, p):
    """Pure-JAX reference matching the PyTorch forward (NCL convs)."""
    xt = jnp.transpose(x, (0, 2, 1))                      # (B, Cin, L)
    w1 = jnp.stack([p["w1a"].T, p["w1b"].T], axis=-1)     # (H, Cin, 2) OIK
    w2 = jnp.stack([p["w2a"].T, p["w2b"].T], axis=-1)     # (H, H, 2)
    dn = ("NCH", "OIH", "NCH")
    h = jax.lax.conv_general_dilated(xt, w1, (1,), "VALID", dimension_numbers=dn)
    h = jnp.maximum(h + p["b1"].reshape(1, -1, 1), 0.0)
    h = jax.lax.conv_general_dilated(h, w2, (1,), "VALID", dimension_numbers=dn)
    h = jnp.maximum(h + p["b2"].reshape(1, -1, 1), 0.0)
    pooled = jnp.mean(h, axis=-1)                         # (B, H)
    feats = jnp.maximum(pooled @ p["wfc"] + p["bfc"], 0.0)
    outcome = jax.nn.sigmoid(feats @ p["wout"] + p["bout"])
    return feats, outcome


if __name__ == "__main__":
    B, L, C = 2, 8, 4          # batch, seq, num_features
    H, O = 32, 16              # hidden_dim, output_dim

    key = jax.random.PRNGKey(0)
    ks = jax.random.split(key, 12)
    x = jax.random.normal(ks[0], (B, L, C), jnp.float32)
    params = dict(
        w1a=0.1 * jax.random.normal(ks[1], (C, H), jnp.float32),
        w1b=0.1 * jax.random.normal(ks[2], (C, H), jnp.float32),
        b1=0.1 * jax.random.normal(ks[3], (1, H), jnp.float32),
        w2a=0.1 * jax.random.normal(ks[4], (H, H), jnp.float32),
        w2b=0.1 * jax.random.normal(ks[5], (H, H), jnp.float32),
        b2=0.1 * jax.random.normal(ks[6], (1, H), jnp.float32),
        wfc=0.1 * jax.random.normal(ks[7], (H, O), jnp.float32),
        bfc=0.1 * jax.random.normal(ks[8], (1, O), jnp.float32),
        wout=0.1 * jax.random.normal(ks[9], (O, 1), jnp.float32),
        bout=0.1 * jax.random.normal(ks[10], (1, 1), jnp.float32),
    )

    feats, outcome = fin_forward(x, params)
    jax.block_until_ready((feats, outcome))

    feats_ref, outcome_ref = fin_reference(x, params)
    assert feats.shape == (B, O) and outcome.shape == (B, 1)
    assert jnp.allclose(feats, feats_ref, atol=2e-5, rtol=1e-4)
    assert jnp.allclose(outcome, outcome_ref, atol=2e-5, rtol=1e-4)

    print("KERNEL_OK")
</pallas_src>

<mosaic_0001>
module attributes {stable_mosaic.version = 11 : i64} {
  func.func @fin_kernel(%arg0: i32, %arg1: memref<2x32xf32, #tpu.memory_space<vmem>>, %arg2: memref<32x224xf32, #tpu.memory_space<vmem>>, %arg3: memref<1x224xf32, #tpu.memory_space<vmem>>, %arg4: memref<224x192xf32, #tpu.memory_space<vmem>>, %arg5: memref<1x192xf32, #tpu.memory_space<vmem>>, %arg6: memref<192x128xf32, #tpu.memory_space<vmem>>, %arg7: memref<1x128xf32, #tpu.memory_space<vmem>>, %arg8: memref<1x128xf32, #tpu.memory_space<vmem>>, %arg9: memref<1x1xf32, #tpu.memory_space<vmem>>, %arg10: memref<2x128xf32, #tpu.memory_space<vmem>>) attributes {dimension_semantics = [#tpu.dimension_semantics<parallel>], iteration_bounds = array<i64: 1>, scalar_prefetch = 0 : i64, scratch_operands = 0 : i64, tpu.core_type = #tpu.core_type<tc>, window_params = [{transform_indices = @transform_0, window_bounds = array<i64: 2, 32>}, {pipeline_mode = #tpu.pipeline_mode<synchronous>, transform_indices = @transform_1, window_bounds = array<i64: 32, 224>}, {pipeline_mode = #tpu.pipeline_mode<synchronous>, transform_indices = @transform_2, window_bounds = array<i64: 1, 224>}, {pipeline_mode = #tpu.pipeline_mode<synchronous>, transform_indices = @transform_3, window_bounds = array<i64: 224, 192>}, {pipeline_mode = #tpu.pipeline_mode<synchronous>, transform_indices = @transform_4, window_bounds = array<i64: 1, 192>}, {pipeline_mode = #tpu.pipeline_mode<synchronous>, transform_indices = @transform_5, window_bounds = array<i64: 192, 128>}, {pipeline_mode = #tpu.pipeline_mode<synchronous>, transform_indices = @transform_6, window_bounds = array<i64: 1, 128>}, {pipeline_mode = #tpu.pipeline_mode<synchronous>, transform_indices = @transform_7, window_bounds = array<i64: 1, 128>}, {pipeline_mode = #tpu.pipeline_mode<synchronous>, transform_indices = @transform_8, window_bounds = array<i64: 1, 1>}, {transform_indices = @transform_9, window_bounds = array<i64: 2, 128>}]} {
    %c0 = arith.constant 0 : index
    %c0_0 = arith.constant 0 : index
    %0 = vector.load %arg1[%c0, %c0_0] : memref<2x32xf32, #tpu.memory_space<vmem>>, vector<2x32xf32>
    %c0_1 = arith.constant 0 : index
    %c0_2 = arith.constant 0 : index
    %1 = vector.load %arg2[%c0_1, %c0_2] : memref<32x224xf32, #tpu.memory_space<vmem>>, vector<32x224xf32>
    %cst = arith.constant dense<0.000000e+00> : vector<2x224xf32>
    %2 = tpu.matmul %0, %1, %cst {dimension_numbers = #tpu.dot_dimension_numbers<[1], [0], [0], [1], [0, 0, 1, 1], [], []>} : vector<2x32xf32>, vector<32x224xf32>, vector<2x224xf32> -> vector<2x224xf32>
    %c0_3 = arith.constant 0 : index
    %c0_4 = arith.constant 0 : index
    %3 = vector.load %arg3[%c0_3, %c0_4] : memref<1x224xf32, #tpu.memory_space<vmem>>, vector<1x224xf32>
    %4 = vector.broadcast %3 : vector<1x224xf32> to vector<2x224xf32>
    %5 = arith.addf %2, %4 : vector<2x224xf32>
    %cst_5 = arith.constant 0.000000e+00 : f32
    %6 = vector.broadcast %cst_5 : f32 to vector<2x224xf32>
    %7 = arith.maximumf %5, %6 : vector<2x224xf32>
    %c0_6 = arith.constant 0 : index
    %c0_7 = arith.constant 0 : index
    %8 = vector.load %arg4[%c0_6, %c0_7] : memref<224x192xf32, #tpu.memory_space<vmem>>, vector<224x192xf32>
    %cst_8 = arith.constant dense<0.000000e+00> : vector<2x192xf32>
    %9 = tpu.matmul %7, %8, %cst_8 {dimension_numbers = #tpu.dot_dimension_numbers<[1], [0], [0], [1], [0, 0, 1, 1], [], []>} : vector<2x224xf32>, vector<224x192xf32>, vector<2x192xf32> -> vector<2x192xf32>
    %c0_9 = arith.constant 0 : index
    %c0_10 = arith.constant 0 : index
    %10 = vector.load %arg5[%c0_9, %c0_10] : memref<1x192xf32, #tpu.memory_space<vmem>>, vector<1x192xf32>
    %11 = vector.broadcast %10 : vector<1x192xf32> to vector<2x192xf32>
    %12 = arith.addf %9, %11 : vector<2x192xf32>
    %cst_11 = arith.constant 0.000000e+00 : f32
    %13 = vector.broadcast %cst_11 : f32 to vector<2x192xf32>
    %14 = arith.maximumf %12, %13 : vector<2x192xf32>
    %c0_12 = arith.constant 0 : index
    %c0_13 = arith.constant 0 : index
    %15 = vector.load %arg6[%c0_12, %c0_13] : memref<192x128xf32, #tpu.memory_space<vmem>>, vector<192x128xf32>
    %cst_14 = arith.constant dense<0.000000e+00> : vector<2x128xf32>
    %16 = tpu.matmul %14, %15, %cst_14 {dimension_numbers = #tpu.dot_dimension_numbers<[1], [0], [0], [1], [0, 0, 1, 1], [], []>} : vector<2x192xf32>, vector<192x128xf32>, vector<2x128xf32> -> vector<2x128xf32>
    %c0_15 = arith.constant 0 : index
    %c0_16 = arith.constant 0 : index
    %17 = vector.load %arg7[%c0_15, %c0_16] : memref<1x128xf32, #tpu.memory_space<vmem>>, vector<1x128xf32>
    %18 = vector.broadcast %17 : vector<1x128xf32> to vector<2x128xf32>
    %19 = arith.addf %16, %18 : vector<2x128xf32>
    %cst_17 = arith.constant 0.000000e+00 : f32
    %20 = vector.broadcast %cst_17 : f32 to vector<2x128xf32>
    %21 = arith.maximumf %19, %20 : vector<2x128xf32>
    %c0_18 = arith.constant 0 : index
    %c0_19 = arith.constant 0 : index
    %22 = vector.load %arg8[%c0_18, %c0_19] : memref<1x128xf32, #tpu.memory_space<vmem>>, vector<1x128xf32>
    %23 = vector.broadcast %22 : vector<1x128xf32> to vector<2x128xf32>
    %24 = arith.mulf %21, %23 : vector<2x128xf32>
    %cst_20 = arith.constant dense<0.000000e+00> : vector<2xf32>
    %25 = vector.multi_reduction <add>, %24, %cst_20 [1] : vector<2x128xf32> to vector<2xf32>
    %26 = vector.shape_cast %25 : vector<2xf32> to vector<2x1xf32>
    %c0_21 = arith.constant 0 : index
    %c0_22 = arith.constant 0 : index
    %27 = vector.load %arg9[%c0_21, %c0_22] : memref<1x1xf32, #tpu.memory_space<vmem>>, vector<1x1xf32>
    %28 = vector.broadcast %27 : vector<1x1xf32> to vector<2x1xf32>
    %29 = arith.addf %26, %28 : vector<2x1xf32>
    %30 = arith.negf %29 : vector<2x1xf32>
    %31 = math.exp %30 : vector<2x1xf32>
    %cst_23 = arith.constant 1.000000e+00 : f32
    %32 = vector.broadcast %cst_23 : f32 to vector<2x1xf32>
    %33 = arith.addf %32, %31 : vector<2x1xf32>
    %34 = arith.divf %32, %33 : vector<2x1xf32>
    %35 = tpu.iota {dimensions = array<i32: 1>} : vector<2x128xi32>
    %c16_i32 = arith.constant 16 : i32
    %36 = vector.broadcast %c16_i32 : i32 to vector<2x128xi32>
    %37 = arith.cmpi eq, %35, %36 : vector<2x128xi32>
    %38 = vector.shape_cast %34 : vector<2x1xf32> to vector<2x1xf32>
    %39 = vector.broadcast %38 : vector<2x1xf32> to vector<2x128xf32>
    %40 = arith.select %37, %39, %21 : vector<2x128xi1>, vector<2x128xf32>
    %c0_24 = arith.constant 0 : index
    %c0_25 = arith.constant 0 : index
    %41 = vector.load %arg10[%c0_24, %c0_25] : memref<2x128xf32, #tpu.memory_space<vmem>>, vector<2x128xf32>
    tpu.vector_store %arg10[%c0_24, %c0_25], %40 {strides = array<i32>} : memref<2x128xf32, #tpu.memory_space<vmem>>, vector<2x128xf32>,
    return
  }
  func.func @transform_0(%arg0: i32) -> (i32, i32) {
    %c0_i32 = arith.constant 0 : i32
    %c0_i32_0 = arith.constant 0 : i32
    return %arg0, %c0_i32 : i32, i32
  }
  func.func @transform_1(%arg0: i32) -> (i32, i32) {
    %c0_i32 = arith.constant 0 : i32
    %c0_i32_0 = arith.constant 0 : i32
    %c0_i32_1 = arith.constant 0 : i32
    return %c0_i32, %c0_i32_0 : i32, i32
  }
  func.func @transform_2(%arg0: i32) -> (i32, i32) {
    %c0_i32 = arith.constant 0 : i32
    %c0_i32_0 = arith.constant 0 : i32
    %c0_i32_1 = arith.constant 0 : i32
    return %c0_i32, %c0_i32_0 : i32, i32
  }
  func.func @transform_3(%arg0: i32) -> (i32, i32) {
    %c0_i32 = arith.constant 0 : i32
    %c0_i32_0 = arith.constant 0 : i32
    %c0_i32_1 = arith.constant 0 : i32
    return %c0_i32, %c0_i32_0 : i32, i32
  }
  func.func @transform_4(%arg0: i32) -> (i32, i32) {
    %c0_i32 = arith.constant 0 : i32
    %c0_i32_0 = arith.constant 0 : i32
    %c0_i32_1 = arith.constant 0 : i32
    return %c0_i32, %c0_i32_0 : i32, i32
  }
  func.func @transform_5(%arg0: i32) -> (i32, i32) {
    %c0_i32 = arith.constant 0 : i32
    %c0_i32_0 = arith.constant 0 : i32
    %c0_i32_1 = arith.constant 0 : i32
    return %c0_i32, %c0_i32_0 : i32, i32
  }
  func.func @transform_6(%arg0: i32) -> (i32, i32) {
    %c0_i32 = arith.constant 0 : i32
    %c0_i32_0 = arith.constant 0 : i32
    %c0_i32_1 = arith.constant 0 : i32
    return %c0_i32, %c0_i32_0 : i32, i32
  }
  func.func @transform_7(%arg0: i32) -> (i32, i32) {
    %c0_i32 = arith.constant 0 : i32
    %c0_i32_0 = arith.constant 0 : i32
    %c0_i32_1 = arith.constant 0 : i32
    return %c0_i32, %c0_i32_0 : i32, i32
  }
  func.func @transform_8(%arg0: i32) -> (i32, i32) {
    %c0_i32 = arith.constant 0 : i32
    %c0_i32_0 = arith.constant 0 : i32
    %c0_i32_1 = arith.constant 0 : i32
    return %c0_i32, %c0_i32_0 : i32, i32
  }
  func.func @transform_9(%arg0: i32) -> (i32, i32) {
    %c0_i32 = arith.constant 0 : i32
    %c0_i32_0 = arith.constant 0 : i32
    return %arg0, %c0_i32 : i32, i32
  }
}

</mosaic_0001>

<llo_original>
// kernel: tpu_custom_call.1
$region0: #{tpu_custom_call.1}
  #allocation0 [shape = 'u32[]', space=smem, size = 0x4, offset = 0x4, fixed_abs, tag = 'smem constant byte address 0x4 - core index']
  #allocation1 [shape = 'u32[144,128]{1,0:T(1,128)}', space=vmem, size = 0x12000, scoped, tag = 'internal scratch']
  #allocation2 [shape = 'f32[1,1]{1,0:T(1,128)S(1)}', space=vmem, size = 0x200, scoped, tag = 'scoped memory for tpu_custom_call.1']
  %s0 = inlined_call_operand.vmem [shape: f32[2,32], index: 0, kind: input, shape index: {}]
  %s1 = inlined_call_operand.vmem [shape: f32[32,224], index: 1, kind: input, shape index: {}]
  %s2 = inlined_call_operand.vmem [shape: f32[1,224], index: 2, kind: input, shape index: {}]
  %s3 = inlined_call_operand.vmem [shape: f32[224,192], index: 3, kind: input, shape index: {}]
  %s4 = inlined_call_operand.vmem [shape: f32[1,192], index: 4, kind: input, shape index: {}]
  %s5 = inlined_call_operand.vmem [shape: f32[192,128], index: 5, kind: input, shape index: {}]
  %s6 = inlined_call_operand.vmem [shape: f32[1,128], index: 6, kind: input, shape index: {}]
  %s7 = inlined_call_operand.vmem [shape: f32[1,128], index: 7, kind: input, shape index: {}]
  %s8 = inlined_call_operand.<no memory space> [shape: f32[1,1], index: 8, kind: input, shape index: {}]
  %s9 = inlined_call_operand.hbm [shape: f32[2,128], index: 9, kind: output, shape index: {}]
  %s10 = sld [smem:[#allocation0]]
  $region46: #{tpu_custom_call.1} parent=0
    _
  %s12 = ssub.s32 1, %s10
  %s13 = scalar_select 0, %s12, %s10
  %v14 = vstv %s8
  %15 = vst [vmem:[#allocation2] sm:$0x1] %v14
  $region1: #{tpu_custom_call.1} parent=0
    #allocation3 [shape = 'u8[1024]{0}', space=vmem, size = 0x400, scoped, tag = 'output window, operand 0, single buffered']
    #allocation4 [shape = 's32[1]{0}', space=sflag, size = 0x4, scoped, tag = 'scoped memory for tpu_custom_call.1']
    %16 = vsyncpa [#allocation4], 0
    // Predicated region
    $region2: #{tpu_custom_call.1} parent=1 // pred_check
      _
    $region3: #{tpu_custom_call.1} parent=1 // pred_check_branch
      %18 = sbr.rel (0) target = $region5
    $region4: #{tpu_custom_call.1} parent=1 // pred_region
      _
    $region5: #{tpu_custom_call.1} parent=1 // pred_fallthru
      _
    // Predicated region
    $region6: #{tpu_custom_call.1} parent=1 // pred_check
      _
    $region7: #{tpu_custom_call.1} parent=1 // pred_check_branch
      %20 = sbr.rel (0) target = $region9
    $region8: #{tpu_custom_call.1} parent=1 // pred_region
      _
    $region9: #{tpu_custom_call.1} parent=1 // pred_fallthru
      _
    // Predicated region
    $region10: #{tpu_custom_call.1} parent=1 // pred_check
      _
    $region11: #{tpu_custom_call.1} parent=1 // pred_check_branch
      %22 = sbr.rel (0) target = $region13
    $region12: #{tpu_custom_call.1} parent=1 // pred_region
      _
    $region13: #{tpu_custom_call.1} parent=1 // pred_fallthru
      _
    // Predicated region
    $region14: #{tpu_custom_call.1} parent=1 // pred_check
      _
    $region15: #{tpu_custom_call.1} parent=1 // pred_check_branch
      %24 = sbr.rel (0) target = $region17
    $region16: #{tpu_custom_call.1} parent=1 // pred_region
      _
    $region17: #{tpu_custom_call.1} parent=1 // pred_fallthru
      _
    // Predicated region
    $region18: #{tpu_custom_call.1} parent=1 // pred_check
      _
    $region19: #{tpu_custom_call.1} parent=1 // pred_check_branch
      %26 = sbr.rel (0) target = $region21
    $region20: #{tpu_custom_call.1} parent=1 // pred_region
      _
    $region21: #{tpu_custom_call.1} parent=1 // pred_fallthru
      _
    // Predicated region
    $region22: #{tpu_custom_call.1} parent=1 // pred_check
      _
    $region23: #{tpu_custom_call.1} parent=1 // pred_check_branch
      %28 = sbr.rel (0) target = $region25
    $region24: #{tpu_custom_call.1} parent=1 // pred_region
      _
    $region25: #{tpu_custom_call.1} parent=1 // pred_fallthru
      _
    // Predicated region
    $region26: #{tpu_custom_call.1} parent=1 // pred_check
      _
    $region27: #{tpu_custom_call.1} parent=1 // pred_check_branch
      %30 = sbr.rel (0) target = $region29
    $region28: #{tpu_custom_call.1} parent=1 // pred_region
      _
    $region29: #{tpu_custom_call.1} parent=1 // pred_fallthru
      _
    // Predicated region
    $region30: #{tpu_custom_call.1} parent=1 // pred_check
      _
    $region31: #{tpu_custom_call.1} parent=1 // pred_check_branch
      %32 = sbr.rel (0) target = $region33
    $region32: #{tpu_custom_call.1} parent=1 // pred_region
      _
    $region33: #{tpu_custom_call.1} parent=1 // pred_fallthru
      _
    // Predicated region
    $region34: #{tpu_custom_call.1} parent=1 // pred_check
      _
    $region35: #{tpu_custom_call.1} parent=1 // pred_check_branch
      %34 = sbr.rel (0) target = $region37
    $region36: #{tpu_custom_call.1} parent=1 // pred_region
      _
    $region37: #{tpu_custom_call.1} parent=1 // pred_fallthru
      _
    %v35 = vld [vmem:[%s0] sm:$0x3]
    %v36 = vld [vmem:[%s1] sm:$0xff]
    %v37 = vld [vmem:[%s1 + $0x8] sm:$0xff]
    %v38 = vld [vmem:[%s1 + $0x10] sm:$0xff]
    %v39 = vld [vmem:[%s1 + $0x18] sm:$0xff]
    %v40 = vld [vmem:[%s1 + $0x20] sm:$0xff]
    %v41 = vld [vmem:[%s1 + $0x28] sm:$0xff]
    %v42 = vld [vmem:[%s1 + $0x30] sm:$0xff]
    %v43 = vld [vmem:[%s1 + $0x38] sm:$0xff]
    %v44 = vld [vmem:[%s2] sm:$0x3]
    %v46 = vlaneseq
    %v47 = vshrl.u32 %v46, 7
    %v48 = vsub.s32 0, %v47
    %v49 = vrot.slane %v44, %v48
    %v50 = vlaneseq
    %v51 = vshrl.u32 %v50, 7
    %v52 = vsub.s32 1, %v51
    %v53 = vrot.slane %v44, %v52
    %vm56 = vcmask 261120
    %v58 = vsel %vm56, %v35, 0
    %60 = vmatprep.subr.mxu0 %v37
    %61 = vmatpush1.msra.mxu0 %v36
    %62 = vmatprep.subr.mxu0 %v39
    %63 = vmatpush1.msra.mxu0 %v38
    %64 = vmatprep.subr.mxu0 %v41
    %65 = vmatpush1.msra.mxu0 %v40
    %66 = vmatprep.subr.mxu0 %v43
    %67 = vmatpush1.msra.mxu0 %v42
    %68 = vmatprep.subr.mxu0 0.0
    %69 = vmatpush1.msra.mxu0 0.0
    %70 = vmatprep.subr.mxu0 0.0
    %71 = vmatpush1.msra.mxu0 0.0
    %72 = vmatprep.subr.mxu0 0.0
    %73 = vmatpush1.msra.mxu0 0.0
    %74 = vmatprep.subr.mxu0 0.0
    %75 = vmatpush1.msra.mxu0 0.0
    %76 = vmatprep.subr.mxu0 0.0
    %77 = vmatpush1.msra.mxu0 0.0
    %78 = vmatprep.subr.mxu0 0.0
    %79 = vmatpush1.msra.mxu0 0.0
    %80 = vmatprep.subr.mxu0 0.0
    %81 = vmatpush1.msra.mxu0 0.0
    %82 = vmatprep.subr.mxu0 0.0
    %83 = vmatpush1.msra.mxu0 0.0
    %84 = vmatprep.subr.mxu0 0.0
    %85 = vmatpush1.msra.mxu0 0.0
    %86 = vmatprep.subr.mxu0 0.0
    %87 = vmatpush1.msra.mxu0 0.0
    %88 = vmatprep.subr.mxu0 0.0
    %89 = vmatpush1.msra.mxu0 0.0
    %90 = vmatprep.subr.mxu0 0.0
    %91 = vmatpush1.msra.mxu0 0.0
    %92 = vmatprep.subr.mxu0 0.0
    %93 = vmatpush1.msra.mxu0 0.0
    %94 = vmatprep.subr.mxu0 0.0
    %95 = vmatpush1.msra.mxu0 0.0
    %96 = vmatprep.subr.mxu0 0.0
    %97 = vmatpush1.msra.mxu0 0.0
    %98 = vmatprep.subr.mxu0 0.0
    %99 = vmatpush1.msra.mxu0 0.0
    %100 = vmatprep.subr.mxu0 0.0
    %101 = vmatpush1.msra.mxu0 0.0
    %102 = vmatprep.subr.mxu0 0.0
    %103 = vmatpush1.msra.mxu0 0.0
    %104 = vmatprep.subr.mxu0 0.0
    %105 = vmatpush1.msra.mxu0 0.0
    %106 = vmatprep.subr.mxu0 0.0
    %107 = vmatpush1.msra.mxu0 0.0
    %108 = vmatprep.subr.mxu0 0.0
    %109 = vmatpush1.msra.mxu0 0.0
    %110 = vmatprep.subr.mxu0 0.0
    %111 = vmatpush1.msra.mxu0 0.0
    %112 = vmatprep.subr.mxu0 0.0
    %113 = vmatpush1.msra.mxu0 0.0
    %114 = vmatprep.subr.mxu0 0.0
    %115 = vmatpush1.msra.mxu0 0.0
    %116 = vmatprep.subr.mxu0 0.0
    %117 = vmatpush1.msra.mxu0 0.0
    %118 = vmatprep.subr.mxu0 0.0
    %119 = vmatpush1.msra.mxu0 0.0
    %120 = vmatprep.subr.mxu0 0.0
    %121 = vmatpush1.msra.mxu0 0.0
    %122 = vmatprep.subr.mxu0 0.0
    %123 = vmatpush1.msra.mxu0 0.0
    %124 = vmatprep.mubr.f32.mxu0 0.0
    %125 = vmatmul.mubr.f32.gmra.mrb[0].mxu0 %v58
    %v126 = vpop.f32.mrb[0].mxu0
    %v127 = vadd.f32 %v49, %v126
    %v128 = vpop.f32.mrb[0].mxu0
    %v129 = vadd.f32 %v53, %v128
    %130 = vdwg.mxu0
    %v131 = vmax.f32 %v127, 0.0
    %v132 = vmax.f32 %v129, 0.0
    %v133 = vld [vmem:[%s3] sm:$0xff]
    %v134 = vld [vmem:[%s3 + $0x8] sm:$0xff]
    %v135 = vld [vmem:[%s3 + $0x10] sm:$0xff]
    %v136 = vld [vmem:[%s3 + $0x18] sm:$0xff]
    %v137 = vld [vmem:[%s3 + $0x20] sm:$0xff]
    %v138 = vld [vmem:[%s3 + $0x28] sm:$0xff]
    %v139 = vld [vmem:[%s3 + $0x30] sm:$0xff]
    %v140 = vld [vmem:[%s3 + $0x38] sm:$0xff]
    %v141 = vld [vmem:[%s3 + $0x40] sm:$0xff]
    %v142 = vld [vmem:[%s3 + $0x48] sm:$0xff]
    %v143 = vld [vmem:[%s3 + $0x50] sm:$0xff]
    %v144 = vld [vmem:[%s3 + $0x58] sm:$0xff]
    %v145 = vld [vmem:[%s3 + $0x60] sm:$0xff]
    %v146 = vld [vmem:[%s3 + $0x68] sm:$0xff]
    %v147 = vld [vmem:[%s3 + $0x70] sm:$0xff]
    %v148 = vld [vmem:[%s3 + $0x78] sm:$0xff]
    %v149 = vld [vmem:[%s3 + $0x80] sm:$0xff]
    %v150 = vld [vmem:[%s3 + $0x88] sm:$0xff]
    %v151 = vld [vmem:[%s3 + $0x90] sm:$0xff]
    %v152 = vld [vmem:[%s3 + $0x98] sm:$0xff]
    %v153 = vld [vmem:[%s3 + $0xa0] sm:$0xff]
    %v154 = vld [vmem:[%s3 + $0xa8] sm:$0xff]
    %v155 = vld [vmem:[%s3 + $0xb0] sm:$0xff]
    %v156 = vld [vmem:[%s3 + $0xb8] sm:$0xff]
    %v157 = vld [vmem:[%s3 + $0xc0] sm:$0xff]
    %v158 = vld [vmem:[%s3 + $0xc8] sm:$0xff]
    %v159 = vld [vmem:[%s3 + $0xd0] sm:$0xff]
    %v160 = vld [vmem:[%s3 + $0xd8] sm:$0xff]
    %v161 = vld [vmem:[%s3 + $0xe0] sm:$0xff]
    %v162 = vld [vmem:[%s3 + $0xe8] sm:$0xff]
    %v163 = vld [vmem:[%s3 + $0xf0] sm:$0xff]
    %v164 = vld [vmem:[%s3 + $0xf8] sm:$0xff]
    %v165 = vld [vmem:[%s3 + $0x100] sm:$0xff]
    %v166 = vld [vmem:[%s3 + $0x108] sm:$0xff]
    %v167 = vld [vmem:[%s3 + $0x110] sm:$0xff]
    %v168 = vld [vmem:[%s3 + $0x118] sm:$0xff]
    %v169 = vld [vmem:[%s3 + $0x120] sm:$0xff]
    %v170 = vld [vmem:[%s3 + $0x128] sm:$0xff]
    %v171 = vld [vmem:[%s3 + $0x130] sm:$0xff]
    %v172 = vld [vmem:[%s3 + $0x138] sm:$0xff]
    %v173 = vld [vmem:[%s3 + $0x140] sm:$0xff]
    %v174 = vld [vmem:[%s3 + $0x148] sm:$0xff]
    %v175 = vld [vmem:[%s3 + $0x150] sm:$0xff]
    %v176 = vld [vmem:[%s3 + $0x158] sm:$0xff]
    %v177 = vld [vmem:[%s3 + $0x160] sm:$0xff]
    %v178 = vld [vmem:[%s3 + $0x168] sm:$0xff]
    %v179 = vld [vmem:[%s3 + $0x170] sm:$0xff]
    %v180 = vld [vmem:[%s3 + $0x178] sm:$0xff]
    %v181 = vld [vmem:[%s3 + $0x180] sm:$0xff]
    %v182 = vld [vmem:[%s3 + $0x188] sm:$0xff]
    %v183 = vld [vmem:[%s3 + $0x190] sm:$0xff]
    %v184 = vld [vmem:[%s3 + $0x198] sm:$0xff]
    %v185 = vld [vmem:[%s3 + $0x1a0] sm:$0xff]
    %v186 = vld [vmem:[%s3 + $0x1a8] sm:$0xff]
    %v187 = vld [vmem:[%s3 + $0x1b0] sm:$0xff]
    %v188 = vld [vmem:[%s3 + $0x1b8] sm:$0xff]
    %v189 = vld [vmem:[%s4] sm:$0x3]
    %v191 = vlaneseq
    %v192 = vshrl.u32 %v191, 7
    %v193 = vsub.s32 0, %v192
    %v194 = vrot.slane %v189, %v193
    %v195 = vlaneseq
    %v196 = vshrl.u32 %v195, 7
    %v197 = vsub.s32 1, %v196
    %v198 = vrot.slane %v189, %v197
    %vm201 = vcmask 785408
    %v203 = vsel %vm201, %v132, 0
    %205 = vmatprep.subr.mxu0 %v134
    %206 = vmatpush1.msra.mxu0 %v133
    %207 = vmatprep.subr.mxu0 %v136
    %208 = vmatpush1.msra.mxu0 %v135
    %209 = vmatprep.subr.mxu0 %v138
    %210 = vmatpush1.msra.mxu0 %v137
    %211 = vmatprep.subr.mxu0 %v140
    %212 = vmatpush1.msra.mxu0 %v139
    %213 = vmatprep.subr.mxu0 %v142
    %214 = vmatpush1.msra.mxu0 %v141
    %215 = vmatprep.subr.mxu0 %v144
    %216 = vmatpush1.msra.mxu0 %v143
    %217 = vmatprep.subr.mxu0 %v146
    %218 = vmatpush1.msra.mxu0 %v145
    %219 = vmatprep.subr.mxu0 %v148
    %220 = vmatpush1.msra.mxu0 %v147
    %221 = vmatprep.subr.mxu0 %v150
    %222 = vmatpush1.msra.mxu0 %v149
    %223 = vmatprep.subr.mxu0 %v152
    %224 = vmatpush1.msra.mxu0 %v151
    %225 = vmatprep.subr.mxu0 %v154
    %226 = vmatpush1.msra.mxu0 %v153
    %227 = vmatprep.subr.mxu0 %v156
    %228 = vmatpush1.msra.mxu0 %v155
    %229 = vmatprep.subr.mxu0 %v158
    %230 = vmatpush1.msra.mxu0 %v157
    %231 = vmatprep.subr.mxu0 %v160
    %232 = vmatpush1.msra.mxu0 %v159
    %233 = vmatprep.subr.mxu0 %v162
    %234 = vmatpush1.msra.mxu0 %v161
    %235 = vmatprep.subr.mxu0 %v164
    %236 = vmatpush1.msra.mxu0 %v163
    %237 = vmatprep.subr.mxu0 %v166
    %238 = vmatpush1.msra.mxu0 %v165
    %239 = vmatprep.subr.mxu0 %v168
    %240 = vmatpush1.msra.mxu0 %v167
    %241 = vmatprep.subr.mxu0 %v170
    %242 = vmatpush1.msra.mxu0 %v169
    %243 = vmatprep.subr.mxu0 %v172
    %244 = vmatpush1.msra.mxu0 %v171
    %245 = vmatprep.subr.mxu0 %v174
    %246 = vmatpush1.msra.mxu0 %v173
    %247 = vmatprep.subr.mxu0 %v176
    %248 = vmatpush1.msra.mxu0 %v175
    %249 = vmatprep.subr.mxu0 %v178
    %250 = vmatpush1.msra.mxu0 %v177
    %251 = vmatprep.subr.mxu0 %v180
    %252 = vmatpush1.msra.mxu0 %v179
    %253 = vmatprep.subr.mxu0 %v182
    %254 = vmatpush1.msra.mxu0 %v181
    %255 = vmatprep.subr.mxu0 %v184
    %256 = vmatpush1.msra.mxu0 %v183
    %257 = vmatprep.subr.mxu0 %v186
    %258 = vmatpush1.msra.mxu0 %v185
    %259 = vmatprep.subr.mxu0 %v188
    %260 = vmatpush1.msra.mxu0 %v187
    %261 = vmatprep.subr.mxu0 0.0
    %262 = vmatpush1.msra.mxu0 0.0
    %263 = vmatprep.subr.mxu0 0.0
    %264 = vmatpush1.msra.mxu0 0.0
    %265 = vmatprep.subr.mxu0 0.0
    %266 = vmatpush1.msra.mxu0 0.0
    %267 = vmatprep.subr.mxu0 0.0
    %268 = vmatpush1.msra.mxu0 0.0
    %269 = vmatprep.mubr.f32.mxu0 %v203
    %270 = vmatmul.mubr.f32.gmra.mrb[0].mxu0 %v131
    %v271 = vpop.f32.mrb[0].mxu0
    %v272 = vadd.f32 %v194, %v271
    %v273 = vpop.f32.mrb[0].mxu0
    %v274 = vadd.f32 %v198, %v273
    %275 = vdwg.mxu0
    %v276 = vmax.f32 %v272, 0.0
    %v277 = vmax.f32 %v274, 0.0
    %v278 = vld [vmem:[%s5] sm:$0xff]
    %v279 = vld [vmem:[%s5 + $0x8] sm:$0xff]
    %v280 = vld [vmem:[%s5 + $0x10] sm:$0xff]
    %v281 = vld [vmem:[%s5 + $0x18] sm:$0xff]
    %v282 = vld [vmem:[%s5 + $0x20] sm:$0xff]
    %v283 = vld [vmem:[%s5 + $0x28] sm:$0xff]
    %v284 = vld [vmem:[%s5 + $0x30] sm:$0xff]
    %v285 = vld [vmem:[%s5 + $0x38] sm:$0xff]
    %v286 = vld [vmem:[%s5 + $0x40] sm:$0xff]
    %v287 = vld [vmem:[%s5 + $0x48] sm:$0xff]
    %v288 = vld [vmem:[%s5 + $0x50] sm:$0xff]
    %v289 = vld [vmem:[%s5 + $0x58] sm:$0xff]
    %v290 = vld [vmem:[%s5 + $0x60] sm:$0xff]
    %v291 = vld [vmem:[%s5 + $0x68] sm:$0xff]
    %v292 = vld [vmem:[%s5 + $0x70] sm:$0xff]
    %v293 = vld [vmem:[%s5 + $0x78] sm:$0xff]
    %v294 = vld [vmem:[%s5 + $0x80] sm:$0xff]
    %v295 = vld [vmem:[%s5 + $0x88] sm:$0xff]
    %v296 = vld [vmem:[%s5 + $0x90] sm:$0xff]
    %v297 = vld [vmem:[%s5 + $0x98] sm:$0xff]
    %v298 = vld [vmem:[%s5 + $0xa0] sm:$0xff]
    %v299 = vld [vmem:[%s5 + $0xa8] sm:$0xff]
    %v300 = vld [vmem:[%s5 + $0xb0] sm:$0xff]
    %v301 = vld [vmem:[%s5 + $0xb8] sm:$0xff]
    %v302 = vld [vmem:[%s6] sm:$0x1]
    %v304 = vlaneseq
    %v305 = vshrl.u32 %v304, 7
    %v306 = vsub.s32 0, %v305
    %v307 = vrot.slane %v302, %v306
    %vm309 = vcmask 523264
    %v311 = vsel %vm309, %v277, 0
    %313 = vmatprep.subr.mxu0 0.0
    %314 = vmatpush1.msra.mxu0 %v278
    %315 = vmatprep.subr.mxu0 0.0
    %316 = vmatpush1.msra.mxu0 %v279
    %317 = vmatprep.subr.mxu0 0.0
    %318 = vmatpush1.msra.mxu0 %v280
    %319 = vmatprep.subr.mxu0 0.0
    %320 = vmatpush1.msra.mxu0 %v281
    %321 = vmatprep.subr.mxu0 0.0
    %322 = vmatpush1.msra.mxu0 %v282
    %323 = vmatprep.subr.mxu0 0.0
    %324 = vmatpush1.msra.mxu0 %v283
    %325 = vmatprep.subr.mxu0 0.0
    %326 = vmatpush1.msra.mxu0 %v284
    %327 = vmatprep.subr.mxu0 0.0
    %328 = vmatpush1.msra.mxu0 %v285
    %329 = vmatprep.subr.mxu0 0.0
    %330 = vmatpush1.msra.mxu0 %v286
    %331 = vmatprep.subr.mxu0 0.0
    %332 = vmatpush1.msra.mxu0 %v287
    %333 = vmatprep.subr.mxu0 0.0
    %334 = vmatpush1.msra.mxu0 %v288
    %335 = vmatprep.subr.mxu0 0.0
    %336 = vmatpush1.msra.mxu0 %v289
    %337 = vmatprep.subr.mxu0 0.0
    %338 = vmatpush1.msra.mxu0 %v290
    %339 = vmatprep.subr.mxu0 0.0
    %340 = vmatpush1.msra.mxu0 %v291
    %341 = vmatprep.subr.mxu0 0.0
    %342 = vmatpush1.msra.mxu0 %v292
    %343 = vmatprep.subr.mxu0 0.0
    %344 = vmatpush1.msra.mxu0 %v293
    %345 = vmatprep.subr.mxu0 0.0
    %346 = vmatpush1.msra.mxu0 %v294
    %347 = vmatprep.subr.mxu0 0.0
    %348 = vmatpush1.msra.mxu0 %v295
    %349 = vmatprep.subr.mxu0 0.0
    %350 = vmatpush1.msra.mxu0 %v296
    %351 = vmatprep.subr.mxu0 0.0
    %352 = vmatpush1.msra.mxu0 %v297
    %353 = vmatprep.subr.mxu0 0.0
    %354 = vmatpush1.msra.mxu0 %v298
    %355 = vmatprep.subr.mxu0 0.0
    %356 = vmatpush1.msra.mxu0 %v299
    %357 = vmatprep.subr.mxu0 0.0
    %358 = vmatpush1.msra.mxu0 %v300
    %359 = vmatprep.subr.mxu0 0.0
    %360 = vmatpush1.msra.mxu0 %v301
    %361 = vmatprep.subr.mxu0 0.0
    %362 = vmatpush1.msra.mxu0 0.0
    %363 = vmatprep.subr.mxu0 0.0
    %364 = vmatpush1.msra.mxu0 0.0
    %365 = vmatprep.subr.mxu0 0.0
    %366 = vmatpush1.msra.mxu0 0.0
    %367 = vmatprep.subr.mxu0 0.0
    %368 = vmatpush1.msra.mxu0 0.0
    %369 = vmatprep.subr.mxu0 0.0
    %370 = vmatpush1.msra.mxu0 0.0
    %371 = vmatprep.subr.mxu0 0.0
    %372 = vmatpush1.msra.mxu0 0.0
    %373 = vmatprep.subr.mxu0 0.0
    %374 = vmatpush1.msra.mxu0 0.0
    %375 = vmatprep.subr.mxu0 0.0
    %376 = vmatpush1.msra.mxu0 0.0
    %377 = vmatprep.mubr.f32.mxu0 %v311
    %378 = vmatmul.mubr.f32.gmra.mrb[0].mxu0 %v276
    %v379 = vpop.f32.mrb[0].mxu0
    %v380 = vadd.f32 %v307, %v379
    %v381 = vpop.f32.mrb[0].mxu0
    %382 = vdwg.mxu0
    %v383 = vmax.f32 %v380, 0.0
    %v384 = vld [vmem:[%s7] sm:$0x1]
    %v386 = vlaneseq
    %v387 = vshrl.u32 %v386, 7
    %v388 = vsub.s32 0, %v387
    %v389 = vrot.slane %v384, %v388
    %v391 = vmul.f32 %v383, %v389
    %vm392 = vcmask 1041408
    %v393 = vsel %vm392, %v391, 0.0
    %394 = vadd.xlane.f32.xlu0 %v393
    %v395 = vpop.xlane.xlu0 %394
    %v396 = vld [vmem:[#allocation2] sm:$0x1]
    %v398 = vlaneseq
    %v399 = vshrl.u32 %v398, 7
    %v400 = vsub.s32 0, %v399
    %v401 = vrot.slane %v396, %v400
    %v403 = vadd.f32 %v395, %v401
    %v404 = vxor.u32 %v403, 2147483648
    %v405 = vmul.f32 %v404, 1.442695
    %v406 = vpow.pop %v405
    %v407 = vadd.f32 %v406, 1.0
    %v408 = vrcp.pop %v407
    %v409 = vmul.f32 1.0, %v408
    %v410 = vlaneseq
    %v411 = vand.u32 %v410, 127
    %vm412 = vcmp.eq.s32.totalorder %v411, 16
    %414 = vset.pattern.permute.xlu0 0
    %415 = vperm.xlu0 %414, %v409
    %v416 = vpop.permute.xlu0 %415
    %v418 = vsel %vm412, %v416, %v383
    %419 = vst [vmem:[#allocation3] sm:$0x3] %v418
    // Predicated region
    $region38: #{tpu_custom_call.1} parent=1 // pred_check
      _
    $region39: #{tpu_custom_call.1} parent=1 // pred_check_branch
      %421 = sbr.rel (0) target = $region41
    $region40: #{tpu_custom_call.1} parent=1 // pred_region
      %s423 = ssub.s32 32, 32
      %424 = vsyncadd [#allocation4], %s423
      %s426 = sshll.u32 [#allocation3], 4
      %s427 = int_to_ptr.vmem [resolvable:$true] %s426
      %429 = dma.vmem_to_hbm [thread:$0]  %s427, 32, %s9, [#allocation4]
    $region41: #{tpu_custom_call.1} parent=1 // pred_fallthru
      _
    // Predicated region
    $region42: #{tpu_custom_call.1} parent=1 // pred_check
      _
    $region43: #{tpu_custom_call.1} parent=1 // pred_check_branch
      %431 = sbr.rel (0) target = $region45
    $region44: #{tpu_custom_call.1} parent=1 // pred_region
      %432 = dma.done [#allocation4], 32
    $region45: #{tpu_custom_call.1} parent=1 // pred_fallthru
      _
    %433 = vsyncpa [#allocation4], 1

</llo_original>
